<compile_context>
chip_gen: v7x
topology: tpu7x:2x2x1
jax: 0.10.0
libtpu: 0.0.40
codegen_flags: <defaults>
</compile_context>

<pallas_src>
import jax
import jax.numpy as jnp
from jax.experimental import pallas as pl
from jax.experimental.pallas import tpu as pltpu

LANE = 128  # TPU lane width


def _round_up(x, m):
    return (x + m - 1) // m * m


def mlp_kernel(x_ref, w1_ref, s1_ref, w2_ref, b2_ref, o_ref):
    # Linear1 + folded BatchNorm(eval): h = (x @ (w1.T * scale)) + (b1*scale + shift)
    h = jnp.dot(x_ref[...], w1_ref[...], preferred_element_type=jnp.float32)
    h = h + s1_ref[...]          # f32 shift (b1*scale + beta - mean*scale)
    h = jnp.maximum(h, 0.0)      # ReLU, f32
    # Dropout(0.4) in eval mode is identity.
    # TODO(synk): training-mode dropout (random mask + 1/(1-p) scale) and
    #             batch-stat BatchNorm are not implemented (inference kernel).
    # Linear2 (output lane-padded to 128): bf16 inputs, f32 accumulate.
    out = jnp.dot(h.astype(w2_ref.dtype), w2_ref[...],
                  preferred_element_type=jnp.float32)
    out = out + b2_ref[...]
    o_ref[...] = out.astype(o_ref.dtype)


def prepare_params(params, eps=1e-5, compute_dtype=jnp.bfloat16):
    """Fold BN(eval) + b1 into the first Linear, transpose, pad, and cast once.

    Returns a dict of arrays ready to feed straight into mlp_forward.
    """
    w1 = params["w1"]            # [D_hid, D_in]   (nn.Linear convention)
    b1 = params["b1"]            # [D_hid]
    gamma = params["gamma"]      # [D_hid]
    beta = params["beta"]        # [D_hid]
    rmean = params["running_mean"]
    rvar = params["running_var"]
    w2 = params["w2"]            # [D_out, D_hid]
    b2 = params["b2"]            # [D_out]

    d_hid, d_in = w1.shape
    d_out = w2.shape[0]
    d_out_p = _round_up(d_out, LANE)   # lane-dense output

    # BN eval fold (all in f32 BEFORE any bf16 cast).
    scale = gamma / jnp.sqrt(rvar + eps)             # [D_hid]
    shift = beta - rmean * scale                     # [D_hid]
    w1_fused = w1.T * scale[None, :]                 # [D_in, D_hid], column-scaled
    shift1 = (b1 * scale + shift).reshape(1, d_hid)  # [1, D_hid], stays f32

    # Second linear, transposed and zero-padded on the output (lane) axis.
    w2_t = w2.T                                      # [D_hid, D_out]
    w2_p = jnp.zeros((d_hid, d_out_p), jnp.float32).at[:, :d_out].set(w2_t)
    b2_p = jnp.zeros((1, d_out_p), jnp.float32).at[0, :d_out].set(b2)

    return {
        "w1": w1_fused.astype(compute_dtype),   # [D_in,  D_hid]  bf16
        "shift1": shift1.astype(jnp.float32),   # [1,     D_hid]  f32
        "w2": w2_p.astype(compute_dtype),       # [D_hid, D_out_p] bf16
        "b2": b2_p.astype(jnp.float32),         # [1,     D_out_p] f32
        "d_out": int(d_out),                    # python int (close over under jit)
    }


def mlp_forward(x, fused, *, batch_tile=128):
    """x: [B, D_in] float32. fused: output of prepare_params (closed over under jit)."""
    B, D_in = x.shape
    D_hid = fused["w1"].shape[1]
    D_out_p = fused["w2"].shape[1]
    d_out = fused["d_out"]

    # Batch tile: multiple of 8 (f32 sublane); cap at `batch_tile` for big batches.
    TB = batch_tile if B >= batch_tile else _round_up(max(B, 8), 8)
    B_pad = _round_up(B, TB)

    x_p = x if B_pad == B else jnp.pad(x, ((0, B_pad - B), (0, 0)))
    x_p = x_p.astype(fused["w1"].dtype)   # bf16 activations into the MXU

    grid = (B_pad // TB,)
    flops = 2 * B_pad * (D_in * D_hid + D_hid * D_out_p)
    bytes_accessed = (
        x_p.size * x_p.dtype.itemsize
        + fused["w1"].size * fused["w1"].dtype.itemsize
        + fused["shift1"].size * 4
        + fused["w2"].size * fused["w2"].dtype.itemsize
        + fused["b2"].size * 4
        + B_pad * D_out_p * 4
    )

    out = pl.pallas_call(
        mlp_kernel,
        out_shape=jax.ShapeDtypeStruct((B_pad, D_out_p), jnp.float32),
        grid_spec=pltpu.PrefetchScalarGridSpec(
            num_scalar_prefetch=0,
            grid=grid,
            in_specs=[
                pl.BlockSpec((TB, D_in), lambda i: (i, 0)),        # x: streamed tiles
                pl.BlockSpec((D_in, D_hid), lambda i: (0, 0)),     # w1: resident
                pl.BlockSpec((1, D_hid), lambda i: (0, 0)),        # shift1: resident
                pl.BlockSpec((D_hid, D_out_p), lambda i: (0, 0)),  # w2: resident
                pl.BlockSpec((1, D_out_p), lambda i: (0, 0)),      # b2: resident
            ],
            out_specs=pl.BlockSpec((TB, D_out_p), lambda i: (i, 0)),
        ),
        compiler_params=pltpu.CompilerParams(
            dimension_semantics=("parallel",),   # shard batch tiles across TCs (v7x)
        ),
        cost_estimate=pl.CostEstimate(
            flops=flops, transcendentals=0, bytes_accessed=bytes_accessed
        ),
    )(x_p, fused["w1"], fused["shift1"], fused["w2"], fused["b2"])

    # Drop batch padding and the lane padding on the output features.
    return out[:B, :d_out]


def init_params(key, input_dim, hidden_dim, output_dim):
    k1, k2, k3, k4, k5, k6, k7, k8 = jax.random.split(key, 8)
    w1 = jax.random.normal(k1, (hidden_dim, input_dim), jnp.float32) * 0.1
    b1 = jax.random.normal(k2, (hidden_dim,), jnp.float32) * 0.1
    gamma = 1.0 + 0.1 * jax.random.normal(k3, (hidden_dim,), jnp.float32)
    beta = 0.1 * jax.random.normal(k4, (hidden_dim,), jnp.float32)
    running_mean = 0.1 * jax.random.normal(k5, (hidden_dim,), jnp.float32)
    running_var = jnp.abs(1.0 + 0.1 * jax.random.normal(k6, (hidden_dim,), jnp.float32))
    w2 = jax.random.normal(k7, (output_dim, hidden_dim), jnp.float32) * 0.1
    b2 = jax.random.normal(k8, (output_dim,), jnp.float32) * 0.1
    return {
        "w1": w1, "b1": b1,
        "gamma": gamma, "beta": beta,
        "running_mean": running_mean, "running_var": running_var,
        "w2": w2, "b2": b2,
    }


def mlp_reference(x, params, eps=1e-5):
    h = x @ params["w1"].T + params["b1"]
    h = (h - params["running_mean"]) / jnp.sqrt(params["running_var"] + eps)
    h = h * params["gamma"] + params["beta"]
    h = jnp.maximum(h, 0.0)
    return h @ params["w2"].T + params["b2"]


if __name__ == "__main__":
    B, D_in, D_hid, D_out = 8, 32, 64, 16
    key = jax.random.PRNGKey(0)
    kx, kp = jax.random.split(key)
    x = jax.random.normal(kx, (B, D_in), jnp.float32)
    params = init_params(kp, D_in, D_hid, D_out)

    # Fuse / transpose / cast weights once, outside the hot path.
    fused = prepare_params(params)
    forward = jax.jit(lambda xx: mlp_forward(xx, fused))

    out = jax.block_until_ready(forward(x))

    ref = mlp_reference(x, params)
    assert out.shape == (B, D_out)
    # bf16 matmul inputs (f32 accumulation) -> compare at bf16-level tolerance.
    assert jnp.allclose(out, ref, atol=3e-2, rtol=3e-2), (
        float(jnp.max(jnp.abs(out - ref)))
    )
    print("KERNEL_OK")
</pallas_src>

<mosaic_0001>
module attributes {stable_mosaic.version = 11 : i64} {
  func.func @mlp_kernel(%arg0: i32, %arg1: memref<8x32xbf16, #tpu.memory_space<vmem>>, %arg2: memref<32x64xbf16, #tpu.memory_space<vmem>>, %arg3: memref<1x64xf32, #tpu.memory_space<vmem>>, %arg4: memref<64x128xbf16, #tpu.memory_space<vmem>>, %arg5: memref<1x128xf32, #tpu.memory_space<vmem>>, %arg6: memref<8x128xf32, #tpu.memory_space<vmem>>) attributes {dimension_semantics = [#tpu.dimension_semantics<parallel>], iteration_bounds = array<i64: 1>, scalar_prefetch = 0 : i64, scratch_operands = 0 : i64, tpu.core_type = #tpu.core_type<tc>, window_params = [{transform_indices = @transform_0, window_bounds = array<i64: 8, 32>}, {pipeline_mode = #tpu.pipeline_mode<synchronous>, transform_indices = @transform_1, window_bounds = array<i64: 32, 64>}, {pipeline_mode = #tpu.pipeline_mode<synchronous>, transform_indices = @transform_2, window_bounds = array<i64: 1, 64>}, {pipeline_mode = #tpu.pipeline_mode<synchronous>, transform_indices = @transform_3, window_bounds = array<i64: 64, 128>}, {pipeline_mode = #tpu.pipeline_mode<synchronous>, transform_indices = @transform_4, window_bounds = array<i64: 1, 128>}, {transform_indices = @transform_5, window_bounds = array<i64: 8, 128>}]} {
    %c0 = arith.constant 0 : index
    %c0_0 = arith.constant 0 : index
    %0 = vector.load %arg1[%c0, %c0_0] : memref<8x32xbf16, #tpu.memory_space<vmem>>, vector<8x32xbf16>
    %c0_1 = arith.constant 0 : index
    %c0_2 = arith.constant 0 : index
    %1 = vector.load %arg2[%c0_1, %c0_2] : memref<32x64xbf16, #tpu.memory_space<vmem>>, vector<32x64xbf16>
    %cst = arith.constant dense<0.000000e+00> : vector<8x64xf32>
    %2 = tpu.matmul %0, %1, %cst {dimension_numbers = #tpu.dot_dimension_numbers<[1], [0], [0], [1], [0, 0, 1, 1], [], []>} : vector<8x32xbf16>, vector<32x64xbf16>, vector<8x64xf32> -> vector<8x64xf32>
    %c0_3 = arith.constant 0 : index
    %c0_4 = arith.constant 0 : index
    %3 = vector.load %arg3[%c0_3, %c0_4] : memref<1x64xf32, #tpu.memory_space<vmem>>, vector<1x64xf32>
    %4 = vector.broadcast %3 : vector<1x64xf32> to vector<8x64xf32>
    %5 = arith.addf %2, %4 : vector<8x64xf32>
    %cst_5 = arith.constant 0.000000e+00 : f32
    %6 = vector.broadcast %cst_5 : f32 to vector<8x64xf32>
    %7 = arith.maximumf %5, %6 : vector<8x64xf32>
    %8 = arith.truncf %7 : vector<8x64xf32> to vector<8x64xbf16>
    %c0_6 = arith.constant 0 : index
    %c0_7 = arith.constant 0 : index
    %9 = vector.load %arg4[%c0_6, %c0_7] : memref<64x128xbf16, #tpu.memory_space<vmem>>, vector<64x128xbf16>
    %cst_8 = arith.constant dense<0.000000e+00> : vector<8x128xf32>
    %10 = tpu.matmul %8, %9, %cst_8 {dimension_numbers = #tpu.dot_dimension_numbers<[1], [0], [0], [1], [0, 0, 1, 1], [], []>} : vector<8x64xbf16>, vector<64x128xbf16>, vector<8x128xf32> -> vector<8x128xf32>
    %c0_9 = arith.constant 0 : index
    %c0_10 = arith.constant 0 : index
    %11 = vector.load %arg5[%c0_9, %c0_10] : memref<1x128xf32, #tpu.memory_space<vmem>>, vector<1x128xf32>
    %12 = vector.broadcast %11 : vector<1x128xf32> to vector<8x128xf32>
    %13 = arith.addf %10, %12 : vector<8x128xf32>
    %c0_11 = arith.constant 0 : index
    %c0_12 = arith.constant 0 : index
    %14 = vector.load %arg6[%c0_11, %c0_12] : memref<8x128xf32, #tpu.memory_space<vmem>>, vector<8x128xf32>
    tpu.vector_store %arg6[%c0_11, %c0_12], %13 {strides = array<i32>} : memref<8x128xf32, #tpu.memory_space<vmem>>, vector<8x128xf32>,
    return
  }
  func.func @transform_0(%arg0: i32) -> (i32, i32) {
    %c0_i32 = arith.constant 0 : i32
    %c0_i32_0 = arith.constant 0 : i32
    return %arg0, %c0_i32 : i32, i32
  }
  func.func @transform_1(%arg0: i32) -> (i32, i32) {
    %c0_i32 = arith.constant 0 : i32
    %c0_i32_0 = arith.constant 0 : i32
    %c0_i32_1 = arith.constant 0 : i32
    return %c0_i32, %c0_i32_0 : i32, i32
  }
  func.func @transform_2(%arg0: i32) -> (i32, i32) {
    %c0_i32 = arith.constant 0 : i32
    %c0_i32_0 = arith.constant 0 : i32
    %c0_i32_1 = arith.constant 0 : i32
    return %c0_i32, %c0_i32_0 : i32, i32
  }
  func.func @transform_3(%arg0: i32) -> (i32, i32) {
    %c0_i32 = arith.constant 0 : i32
    %c0_i32_0 = arith.constant 0 : i32
    %c0_i32_1 = arith.constant 0 : i32
    return %c0_i32, %c0_i32_0 : i32, i32
  }
  func.func @transform_4(%arg0: i32) -> (i32, i32) {
    %c0_i32 = arith.constant 0 : i32
    %c0_i32_0 = arith.constant 0 : i32
    %c0_i32_1 = arith.constant 0 : i32
    return %c0_i32, %c0_i32_0 : i32, i32
  }
  func.func @transform_5(%arg0: i32) -> (i32, i32) {
    %c0_i32 = arith.constant 0 : i32
    %c0_i32_0 = arith.constant 0 : i32
    return %arg0, %c0_i32 : i32, i32
  }
}

</mosaic_0001>

<llo_original>
// kernel: _lambda_.1
$region0: #{_lambda_.1}
  #allocation0 [shape = 'u32[]', space=smem, size = 0x4, offset = 0x4, fixed_abs, tag = 'smem constant byte address 0x4 - core index']
  #allocation1 [shape = 'u32[144,128]{1,0:T(1,128)}', space=vmem, size = 0x12000, scoped, tag = 'internal scratch']
  %s0 = inlined_call_operand.vmem [shape: bf16[8,32], index: 0, kind: input, shape index: {}]
  %s1 = inlined_call_operand.hbm [shape: bf16[32,64], index: 1, kind: input, shape index: {}]
  %s2 = inlined_call_operand.vmem [shape: f32[1,64], index: 2, kind: input, shape index: {}]
  %s3 = inlined_call_operand.vmem [shape: bf16[64,128], index: 3, kind: input, shape index: {}]
  %s4 = inlined_call_operand.vmem [shape: f32[1,128], index: 4, kind: input, shape index: {}]
  %s5 = inlined_call_operand.hbm [shape: f32[8,128], index: 5, kind: output, shape index: {}]
  %s6 = sld [smem:[#allocation0]]
  $region34: #{_lambda_.1} parent=0
    _
  %s8 = ssub.s32 1, %s6
  %s9 = scalar_select 0, %s8, %s6
  $region1: #{_lambda_.1} parent=0
    #allocation2 [shape = 'u8[8192]{0}', space=vmem, size = 0x2000, scoped, tag = 'input window, operand 1, single buffered']
    #allocation3 [shape = 's32[1]{0}', space=sflag, size = 0x4, scoped, tag = 'scoped memory for _lambda_.1']
    #allocation4 [shape = 's32[1]{0}', space=sflag, size = 0x4, scoped, tag = 'scoped memory for _lambda_.1']
    #allocation5 [shape = 'u8[4096]{0}', space=vmem, size = 0x1000, scoped, tag = 'output window, operand 0, single buffered']
    %10 = vsyncpa [#allocation3], 0
    %11 = vsyncpa [#allocation4], 0
    // Predicated region
    $region2: #{_lambda_.1} parent=1 // pred_check
      _
    $region3: #{_lambda_.1} parent=1 // pred_check_branch
      %13 = sbr.rel (0) target = $region5
    $region4: #{_lambda_.1} parent=1 // pred_region
      _
    $region5: #{_lambda_.1} parent=1 // pred_fallthru
      _
    // Predicated region
    $region6: #{_lambda_.1} parent=1 // pred_check
      _
    $region7: #{_lambda_.1} parent=1 // pred_check_branch
      %15 = sbr.rel (0) target = $region9
    $region8: #{_lambda_.1} parent=1 // pred_region
      %s17 = ssub.s32 256, 256
      %18 = vsyncadd [#allocation3], %s17
      %s19 = sshll.u32 [#allocation2], 4
      %s20 = int_to_ptr.vmem [resolvable:$true] %s19
      %25 = dma.hbm_to_vmem [thread:$0]  %s1, 256, %s20, [#allocation3], 64, 64, 4
    $region9: #{_lambda_.1} parent=1 // pred_fallthru
      _
    // Predicated region
    $region10: #{_lambda_.1} parent=1 // pred_check
      _
    $region11: #{_lambda_.1} parent=1 // pred_check_branch
      %27 = sbr.rel (0) target = $region13
    $region12: #{_lambda_.1} parent=1 // pred_region
      _
    $region13: #{_lambda_.1} parent=1 // pred_fallthru
      _
    // Predicated region
    $region14: #{_lambda_.1} parent=1 // pred_check
      _
    $region15: #{_lambda_.1} parent=1 // pred_check_branch
      %29 = sbr.rel (0) target = $region17
    $region16: #{_lambda_.1} parent=1 // pred_region
      _
    $region17: #{_lambda_.1} parent=1 // pred_fallthru
      _
    // Predicated region
    $region18: #{_lambda_.1} parent=1 // pred_check
      _
    $region19: #{_lambda_.1} parent=1 // pred_check_branch
      %31 = sbr.rel (0) target = $region21
    $region20: #{_lambda_.1} parent=1 // pred_region
      _
    $region21: #{_lambda_.1} parent=1 // pred_fallthru
      _
    // Predicated region
    $region22: #{_lambda_.1} parent=1 // pred_check
      _
    $region23: #{_lambda_.1} parent=1 // pred_check_branch
      %33 = sbr.rel (0) target = $region25
    $region24: #{_lambda_.1} parent=1 // pred_region
      %34 = dma.done [#allocation3], 256
    $region25: #{_lambda_.1} parent=1 // pred_fallthru
      _
    %v36 = vld [vmem:[%s0] sm:$0xf]
    %v37 = vld [vmem:[#allocation2] sm:$0xf]
    %v38 = vld [vmem:[#allocation2 + $0x4] sm:$0xf]
    %v39 = vld [vmem:[#allocation2 + $0x8] sm:$0xf]
    %v40 = vld [vmem:[#allocation2 + $0xc] sm:$0xf]
    %v41 = vld [vmem:[%s2] sm:$0x1]
    %v43 = vlaneseq
    %v44 = vshrl.u32 %v43, 7
    %v45 = vsub.s32 0, %v44
    %v46 = vrot.slane %v41, %v45
    %v52 = vunpack.c.l.b16 %v37
    %v53 = vunpack.c.l.b16 %v38
    %v54 = vunpack.c.l.b16 %v39
    %v55 = vunpack.c.l.b16 %v40
    %v56 = vpack.c.b16 %v53, %v52
    %v57 = vpack.c.b16 %v55, %v54
    %vm60 = vcmask 261120
    %v62 = vsel %vm60, %v36, 0
    %64 = vmatprep.subr.bf16.mxu0 0
    %65 = vmatpush1.bf16.msra.mxu0 %v56
    %66 = vmatprep.subr.bf16.mxu0 0
    %67 = vmatpush1.bf16.msra.mxu0 %v57
    %68 = vmatprep.subr.bf16.mxu0 0
    %69 = vmatpush1.bf16.msra.mxu0 0
    %70 = vmatprep.subr.bf16.mxu0 0
    %71 = vmatpush1.bf16.msra.mxu0 0
    %72 = vmatprep.subr.bf16.mxu0 0
    %73 = vmatpush1.bf16.msra.mxu0 0
    %74 = vmatprep.subr.bf16.mxu0 0
    %75 = vmatpush1.bf16.msra.mxu0 0
    %76 = vmatprep.subr.bf16.mxu0 0
    %77 = vmatpush1.bf16.msra.mxu0 0
    %78 = vmatprep.subr.bf16.mxu0 0
    %79 = vmatpush1.bf16.msra.mxu0 0
    %80 = vmatprep.subr.bf16.mxu0 0
    %81 = vmatpush1.bf16.msra.mxu0 0
    %82 = vmatprep.subr.bf16.mxu0 0
    %83 = vmatpush1.bf16.msra.mxu0 0
    %84 = vmatprep.subr.bf16.mxu0 0
    %85 = vmatpush1.bf16.msra.mxu0 0
    %86 = vmatprep.subr.bf16.mxu0 0
    %87 = vmatpush1.bf16.msra.mxu0 0
    %88 = vmatprep.subr.bf16.mxu0 0
    %89 = vmatpush1.bf16.msra.mxu0 0
    %90 = vmatprep.subr.bf16.mxu0 0
    %91 = vmatpush1.bf16.msra.mxu0 0
    %92 = vmatprep.subr.bf16.mxu0 0
    %93 = vmatpush1.bf16.msra.mxu0 0
    %94 = vmatprep.subr.bf16.mxu0 0
    %95 = vmatpush1.bf16.msra.mxu0 0
    %96 = vmatprep.mubr.bf16.mxu0 0
    %97 = vmatmul.mubr.bf16.gmra.mrb[0].mxu0 %v62
    %v98 = vpop.f32.mrb[0].mxu0
    %v99 = vadd.f32 %v46, %v98
    %v100 = vpop.f32.mrb[0].mxu0
    %v101 = vpop.f32.mrb[0].mxu0
    %v102 = vpop.f32.mrb[0].mxu0
    %103 = vdwg.mxu0
    %v104 = vmax.f32 %v99, 0.0
    %v105 = vpack.c.bf16 %v104, %v104
    %v106 = vld [vmem:[%s3] sm:$0xf]
    %v107 = vld [vmem:[%s3 + $0x4] sm:$0xf]
    %v108 = vld [vmem:[%s3 + $0x8] sm:$0xf]
    %v109 = vld [vmem:[%s3 + $0xc] sm:$0xf]
    %v110 = vld [vmem:[%s3 + $0x10] sm:$0xf]
    %v111 = vld [vmem:[%s3 + $0x14] sm:$0xf]
    %v112 = vld [vmem:[%s3 + $0x18] sm:$0xf]
    %v113 = vld [vmem:[%s3 + $0x1c] sm:$0xf]
    %v114 = vld [vmem:[%s4] sm:$0x1]
    %v116 = vlaneseq
    %v117 = vshrl.u32 %v116, 7
    %v118 = vsub.s32 0, %v117
    %v119 = vrot.slane %v114, %v118
    %v129 = vunpack.c.l.b16 %v106
    %v130 = vunpack.c.l.b16 %v107
    %v131 = vunpack.c.l.b16 %v108
    %v132 = vunpack.c.l.b16 %v109
    %v133 = vunpack.c.l.b16 %v110
    %v134 = vunpack.c.l.b16 %v111
    %v135 = vunpack.c.l.b16 %v112
    %v136 = vunpack.c.l.b16 %v113
    %v137 = vpack.c.b16 %v130, %v129
    %v138 = vpack.c.b16 %v132, %v131
    %v139 = vpack.c.b16 %v134, %v133
    %v140 = vpack.c.b16 %v136, %v135
    %vm145 = vcmask 523264
    %v147 = vsel %vm145, %v105, 0
    %149 = vmatprep.subr.bf16.mxu0 0
    %150 = vmatpush1.bf16.msra.mxu0 %v137
    %151 = vmatprep.subr.bf16.mxu0 0
    %152 = vmatpush1.bf16.msra.mxu0 %v138
    %153 = vmatprep.subr.bf16.mxu0 0
    %154 = vmatpush1.bf16.msra.mxu0 %v139
    %155 = vmatprep.subr.bf16.mxu0 0
    %156 = vmatpush1.bf16.msra.mxu0 %v140
    %157 = vmatprep.subr.bf16.mxu0 0
    %158 = vmatpush1.bf16.msra.mxu0 0
    %159 = vmatprep.subr.bf16.mxu0 0
    %160 = vmatpush1.bf16.msra.mxu0 0
    %161 = vmatprep.subr.bf16.mxu0 0
    %162 = vmatpush1.bf16.msra.mxu0 0
    %163 = vmatprep.subr.bf16.mxu0 0
    %164 = vmatpush1.bf16.msra.mxu0 0
    %165 = vmatprep.subr.bf16.mxu0 0
    %166 = vmatpush1.bf16.msra.mxu0 0
    %167 = vmatprep.subr.bf16.mxu0 0
    %168 = vmatpush1.bf16.msra.mxu0 0
    %169 = vmatprep.subr.bf16.mxu0 0
    %170 = vmatpush1.bf16.msra.mxu0 0
    %171 = vmatprep.subr.bf16.mxu0 0
    %172 = vmatpush1.bf16.msra.mxu0 0
    %173 = vmatprep.subr.bf16.mxu0 0
    %174 = vmatpush1.bf16.msra.mxu0 0
    %175 = vmatprep.subr.bf16.mxu0 0
    %176 = vmatpush1.bf16.msra.mxu0 0
    %177 = vmatprep.subr.bf16.mxu0 0
    %178 = vmatpush1.bf16.msra.mxu0 0
    %179 = vmatprep.subr.bf16.mxu0 0
    %180 = vmatpush1.bf16.msra.mxu0 0
    %181 = vmatprep.mubr.bf16.mxu0 0
    %182 = vmatmul.mubr.bf16.gmra.mrb[0].mxu0 %v147
    %v183 = vpop.f32.mrb[0].mxu0
    %v184 = vadd.f32 %v119, %v183
    %v185 = vpop.f32.mrb[0].mxu0
    %v186 = vpop.f32.mrb[0].mxu0
    %v187 = vpop.f32.mrb[0].mxu0
    %188 = vdwg.mxu0
    %189 = vst [vmem:[#allocation5] sm:$0xff] %v184
    // Predicated region
    $region26: #{_lambda_.1} parent=1 // pred_check
      _
    $region27: #{_lambda_.1} parent=1 // pred_check_branch
      %191 = sbr.rel (0) target = $region29
    $region28: #{_lambda_.1} parent=1 // pred_region
      %s193 = ssub.s32 128, 128
      %194 = vsyncadd [#allocation4], %s193
      %s196 = sshll.u32 [#allocation5], 4
      %s197 = int_to_ptr.vmem [resolvable:$true] %s196
      %199 = dma.vmem_to_hbm [thread:$0]  %s197, 128, %s5, [#allocation4]
    $region29: #{_lambda_.1} parent=1 // pred_fallthru
      _
    // Predicated region
    $region30: #{_lambda_.1} parent=1 // pred_check
      _
    $region31: #{_lambda_.1} parent=1 // pred_check_branch
      %201 = sbr.rel (0) target = $region33
    $region32: #{_lambda_.1} parent=1 // pred_region
      %202 = dma.done [#allocation4], 128
    $region33: #{_lambda_.1} parent=1 // pred_fallthru
      _
    %203 = vsyncpa [#allocation3], 1
    %204 = vsyncpa [#allocation4], 1

</llo_original>
